<compile_context>
chip_gen: v6e
topology: v6e:2x2x1
jax: 0.10.0
libtpu: 0.0.40
codegen_flags: <defaults>
</compile_context>

<pallas_src>
import functools
import math

import jax
import jax.numpy as jnp
from jax import lax
from jax.experimental import pallas as pl
from jax.experimental.pallas import tpu as pltpu


_VMEM_LIMIT = 32 * 1024 * 1024  # safe on v5e/v6e (128 MiB) and v7x (64 MiB)


def _cparams(dimension_semantics):
    return pltpu.CompilerParams(dimension_semantics=dimension_semantics,
                                vmem_limit_bytes=_VMEM_LIMIT)


def _tile(dim, target, align):
    """Largest divisor of `dim` that is a multiple of `align` and <= target.
    Falls back to the full dim (no tiling) if none exists."""
    if dim <= target:
        return dim
    t = (target // align) * align
    while t >= align:
        if dim % t == 0:
            return t
        t -= align
    return dim


# ----------------------------------------------------------------------------
# Tiled dense: y = act(x @ w + b), bf16 inputs, f32 accumulation
# ----------------------------------------------------------------------------
def _dense_kernel(x_ref, w_ref, b_ref, o_ref, acc_ref, *, activation):
    k = pl.program_id(2)

    @pl.when(k == 0)
    def _init():
        acc_ref[...] = jnp.zeros_like(acc_ref)

    acc_ref[...] += jnp.dot(x_ref[...], w_ref[...],
                            preferred_element_type=jnp.float32)

    @pl.when(k == pl.num_programs(2) - 1)
    def _finalize():
        y = acc_ref[...] + b_ref[...].astype(jnp.float32)
        if activation == "gelu":
            # tanh-approximated GELU (original BERT formulation), f32 math
            y = 0.5 * y * (1.0 + jnp.tanh(
                0.7978845608028654 * (y + 0.044715 * y * y * y)))
        elif activation == "tanh":
            y = jnp.tanh(y)
        o_ref[...] = y.astype(o_ref.dtype)


def dense(x, w, b, activation="none", out_dtype=jnp.bfloat16):
    """x:(M,K) bf16, w:(K,N) bf16, b:(N,) f32 -> act(x@w+b):(M,N) out_dtype."""
    M, K = x.shape
    N = w.shape[1]
    tm = _tile(M, 256, 8)
    tn = _tile(N, 512, 128)
    tk = _tile(K, 512, 128)
    grid = (M // tm, N // tn, K // tk)
    return pl.pallas_call(
        functools.partial(_dense_kernel, activation=activation),
        out_shape=jax.ShapeDtypeStruct((M, N), out_dtype),
        grid=grid,
        in_specs=[
            pl.BlockSpec((tm, tk), lambda i, j, k: (i, k)),
            pl.BlockSpec((tk, tn), lambda i, j, k: (k, j)),
            pl.BlockSpec((1, tn), lambda i, j, k: (0, j)),
        ],
        out_specs=pl.BlockSpec((tm, tn), lambda i, j, k: (i, j)),
        scratch_shapes=[pltpu.VMEM((tm, tn), jnp.float32)],
        compiler_params=_cparams(("parallel", "parallel", "arbitrary")),
    )(x, w, b.reshape(1, N))


# ----------------------------------------------------------------------------
# Tiled dense with fused residual-add + LayerNorm epilogue
# (LayerNorm reduces over the full N=hidden axis, so N is kept untiled)
# ----------------------------------------------------------------------------
def _dense_ln_kernel(x_ref, w_ref, b_ref, r_ref, g_ref, be_ref, o_ref, acc_ref,
                     *, eps):
    k = pl.program_id(1)

    @pl.when(k == 0)
    def _init():
        acc_ref[...] = jnp.zeros_like(acc_ref)

    acc_ref[...] += jnp.dot(x_ref[...], w_ref[...],
                            preferred_element_type=jnp.float32)

    @pl.when(k == pl.num_programs(1) - 1)
    def _finalize():
        y = (acc_ref[...] + b_ref[...].astype(jnp.float32)
             + r_ref[...].astype(jnp.float32))
        mu = jnp.mean(y, axis=-1, keepdims=True)
        yc = y - mu
        var = jnp.mean(yc * yc, axis=-1, keepdims=True)
        y = yc * lax.rsqrt(var + eps)
        y = y * g_ref[...].astype(jnp.float32) + be_ref[...].astype(jnp.float32)
        o_ref[...] = y.astype(o_ref.dtype)


def dense_ln(x, w, b, residual, gamma, beta, eps=1e-12, out_dtype=jnp.bfloat16):
    """LayerNorm(x @ w + b + residual) over the last dim, fused in one kernel."""
    M, K = x.shape
    N = w.shape[1]
    tm = _tile(M, 256, 8)
    tk = _tile(K, 512, 128)
    grid = (M // tm, K // tk)
    return pl.pallas_call(
        functools.partial(_dense_ln_kernel, eps=eps),
        out_shape=jax.ShapeDtypeStruct((M, N), out_dtype),
        grid=grid,
        in_specs=[
            pl.BlockSpec((tm, tk), lambda i, k: (i, k)),
            pl.BlockSpec((tk, N), lambda i, k: (k, 0)),
            pl.BlockSpec((1, N), lambda i, k: (0, 0)),
            pl.BlockSpec((tm, N), lambda i, k: (i, 0)),
            pl.BlockSpec((1, N), lambda i, k: (0, 0)),
            pl.BlockSpec((1, N), lambda i, k: (0, 0)),
        ],
        out_specs=pl.BlockSpec((tm, N), lambda i, k: (i, 0)),
        scratch_shapes=[pltpu.VMEM((tm, N), jnp.float32)],
        compiler_params=_cparams(("parallel", "arbitrary")),
    )(x, w, b.reshape(1, N), residual, gamma.reshape(1, N), beta.reshape(1, N))


# ----------------------------------------------------------------------------
# Row-tiled LayerNorm (no residual) for the embedding output
# ----------------------------------------------------------------------------
def _ln_kernel(x_ref, g_ref, b_ref, o_ref, *, eps):
    x = x_ref[...].astype(jnp.float32)
    mu = jnp.mean(x, axis=-1, keepdims=True)
    xc = x - mu
    var = jnp.mean(xc * xc, axis=-1, keepdims=True)
    y = xc * lax.rsqrt(var + eps)
    y = y * g_ref[...].astype(jnp.float32) + b_ref[...].astype(jnp.float32)
    o_ref[...] = y.astype(o_ref.dtype)


def layernorm(x, gamma, beta, eps=1e-12, out_dtype=jnp.bfloat16):
    M, H = x.shape
    tm = _tile(M, 512, 8)
    grid = (M // tm,)
    return pl.pallas_call(
        functools.partial(_ln_kernel, eps=eps),
        out_shape=jax.ShapeDtypeStruct((M, H), out_dtype),
        grid=grid,
        in_specs=[
            pl.BlockSpec((tm, H), lambda i: (i, 0)),
            pl.BlockSpec((1, H), lambda i: (0, 0)),
            pl.BlockSpec((1, H), lambda i: (0, 0)),
        ],
        out_specs=pl.BlockSpec((tm, H), lambda i: (i, 0)),
        compiler_params=_cparams(("parallel",)),
    )(x, gamma.reshape(1, H), beta.reshape(1, H))


# ----------------------------------------------------------------------------
# Multi-head self-attention (all-ones mask, default BERT)
# Head split is done in-kernel (static lane slices); output is one lane-dense
# (S, H) store per batch element.
# ----------------------------------------------------------------------------
def _attn_kernel(q_ref, k_ref, v_ref, o_ref, *, heads, scale):
    H = q_ref.shape[2]
    dh = H // heads
    q_all = q_ref[0]          # (S, H) bf16
    k_all = k_ref[0]
    v_all = v_ref[0]
    ctxs = []
    for h in range(heads):
        lo, hi = h * dh, (h + 1) * dh
        qh = q_all[:, lo:hi]
        kh = k_all[:, lo:hi]
        vh = v_all[:, lo:hi]
        # scores = q @ k^T without materializing a transpose
        s = lax.dot_general(qh, kh, (((1,), (1,)), ((), ())),
                            preferred_element_type=jnp.float32) * scale
        m = jnp.max(s, axis=-1, keepdims=True)
        p = jnp.exp(s - m)
        denom = jnp.sum(p, axis=-1, keepdims=True)
        p = p * pl.reciprocal(denom, approx=True)      # divide on the EUP
        ctxs.append(jnp.dot(p.astype(vh.dtype), vh,
                            preferred_element_type=jnp.float32))
    o_ref[0] = jnp.concatenate(ctxs, axis=-1).astype(o_ref.dtype)


def attention(q, k, v, heads):
    """q,k,v: (B, S, H) bf16 -> (B, S, H) bf16. Full (all-ones) attention mask."""
    # TODO(synk): for long sequences, switch to a flash-style K/V-tiled online
    # softmax so the (S,S) score block stays bounded in VMEM (matters on v7x).
    B, S, H = q.shape
    dh = H // heads
    scale = 1.0 / math.sqrt(dh)
    return pl.pallas_call(
        functools.partial(_attn_kernel, heads=heads, scale=scale),
        out_shape=jax.ShapeDtypeStruct((B, S, H), q.dtype),
        grid=(B,),
        in_specs=[
            pl.BlockSpec((1, S, H), lambda b: (b, 0, 0)),
            pl.BlockSpec((1, S, H), lambda b: (b, 0, 0)),
            pl.BlockSpec((1, S, H), lambda b: (b, 0, 0)),
        ],
        out_specs=pl.BlockSpec((1, S, H), lambda b: (b, 0, 0)),
        compiler_params=_cparams(("parallel",)),
    )(q, k, v)


# ----------------------------------------------------------------------------
# Model glue: parameter setup, embedding gather, layer wiring
# ----------------------------------------------------------------------------
def init_params(key, *, vocab, max_pos, type_vocab, hidden, heads,
                intermediate, layers, num_labels):
    keys = iter(jax.random.split(key, 8 + 8 * layers))

    def w(shape, dtype=jnp.bfloat16, scale=0.02):
        return (scale * jax.random.normal(next(keys), shape)).astype(dtype)

    params = {
        "word_emb": w((vocab, hidden), jnp.float32),
        "pos_emb": w((max_pos, hidden), jnp.float32),
        "type_emb": w((type_vocab, hidden), jnp.float32),
        "emb_ln_g": jnp.ones((hidden,), jnp.float32),
        "emb_ln_b": jnp.zeros((hidden,), jnp.float32),
        "layers": [],
        "pool_w": w((hidden, hidden)),
        "pool_b": jnp.zeros((hidden,), jnp.float32),
        "cls_w": w((hidden, num_labels)),
        "cls_b": jnp.zeros((num_labels,), jnp.float32),
        "heads": heads,
    }
    for _ in range(layers):
        params["layers"].append({
            # fused Q/K/V projection: one (H, 3H) weight, one (3H,) bias
            "qkv_w": w((hidden, 3 * hidden)),
            "qkv_b": jnp.zeros((3 * hidden,), jnp.float32),
            "o_w": w((hidden, hidden)),
            "o_b": jnp.zeros((hidden,), jnp.float32),
            "ln1_g": jnp.ones((hidden,), jnp.float32),
            "ln1_b": jnp.zeros((hidden,), jnp.float32),
            "ff1_w": w((hidden, intermediate)),
            "ff1_b": jnp.zeros((intermediate,), jnp.float32),
            "ff2_w": w((intermediate, hidden)),
            "ff2_b": jnp.zeros((hidden,), jnp.float32),
            "ln2_g": jnp.ones((hidden,), jnp.float32),
            "ln2_b": jnp.zeros((hidden,), jnp.float32),
        })
    return params


def encoder_layer(h, p, B, S, heads):
    M, H = h.shape
    # Fused QKV projection (1 kernel instead of 3)
    qkv = dense(h, p["qkv_w"], p["qkv_b"])                       # (M, 3H) bf16
    q = qkv[:, :H].reshape(B, S, H)
    k = qkv[:, H:2 * H].reshape(B, S, H)
    v = qkv[:, 2 * H:].reshape(B, S, H)

    ctx = attention(q, k, v, heads).reshape(M, H)                # (M, H) bf16

    # attention output projection + residual + LayerNorm (fused)
    h = dense_ln(ctx, p["o_w"], p["o_b"], h, p["ln1_g"], p["ln1_b"])

    # FFN: up-projection with fused GELU, down-projection with fused add+LN
    ff = dense(h, p["ff1_w"], p["ff1_b"], activation="gelu")     # (M, I) bf16
    h = dense_ln(ff, p["ff2_w"], p["ff2_b"], h, p["ln2_g"], p["ln2_b"])
    return h


def bert_only_forward(params, input_ids, labels=None):
    """Replicates BertOnly.forward: input ids (B,S) -> logits (B, num_labels).

    labels are ignored for the forward logits path.
    """
    # TODO(synk): cross-entropy loss for the labels!=None path is not implemented
    # (only logits are returned, matching the labels=None path).
    B, S = input_ids.shape
    H = params["word_emb"].shape[1]
    heads = params["heads"]

    # Embedding gathers are glue (plain JAX); everything downstream is Pallas.
    we = jnp.take(params["word_emb"], input_ids, axis=0)          # (B,S,H)
    pe = params["pos_emb"][:S][None, :, :]                        # (1,S,H)
    te = params["type_emb"][0][None, None, :]                     # token_type=0
    emb = (we + pe + te).astype(jnp.float32).reshape(B * S, H)
    h = layernorm(emb, params["emb_ln_g"], params["emb_ln_b"])    # bf16 (M,H)

    for layer_params in params["layers"]:
        h = encoder_layer(h, layer_params, B, S, heads)

    # Pooler: tanh(W * h_CLS + b) on the first token of each sequence.
    cls = h.reshape(B, S, H)[:, 0, :]                             # (B, H) bf16
    pooled = dense(cls, params["pool_w"], params["pool_b"], activation="tanh")
    logits = dense(pooled, params["cls_w"], params["cls_b"],
                   out_dtype=jnp.float32)
    return logits


if __name__ == "__main__":
    B, S = 2, 8
    VOCAB, MAX_POS, TYPE_VOCAB = 100, 32, 2
    HIDDEN, HEADS, INTERMEDIATE, LAYERS, NUM_LABELS = 32, 4, 64, 2, 2

    key = jax.random.PRNGKey(0)
    k_ids, k_params = jax.random.split(key)
    input_ids = jax.random.randint(k_ids, (B, S), 0, VOCAB, dtype=jnp.int32)
    params = init_params(k_params, vocab=VOCAB, max_pos=MAX_POS,
                         type_vocab=TYPE_VOCAB, hidden=HIDDEN, heads=HEADS,
                         intermediate=INTERMEDIATE, layers=LAYERS,
                         num_labels=NUM_LABELS)

    logits = bert_only_forward(params, input_ids)
    logits = jax.block_until_ready(logits)
    assert logits.shape == (B, NUM_LABELS) and logits.dtype == jnp.float32
    print("KERNEL_OK")
</pallas_src>

<mosaic_0001>
module attributes {stable_mosaic.version = 11 : i64} {
  func.func @_ln_kernel(%arg0: i32, %arg1: memref<16x32xf32, #tpu.memory_space<vmem>>, %arg2: memref<1x32xf32, #tpu.memory_space<vmem>>, %arg3: memref<1x32xf32, #tpu.memory_space<vmem>>, %arg4: memref<16x32xbf16, #tpu.memory_space<vmem>>) attributes {dimension_semantics = [#tpu.dimension_semantics<parallel>], iteration_bounds = array<i64: 1>, scalar_prefetch = 0 : i64, scratch_operands = 0 : i64, tpu.core_type = #tpu.core_type<tc>, window_params = [{transform_indices = @transform_0, window_bounds = array<i64: 16, 32>}, {pipeline_mode = #tpu.pipeline_mode<synchronous>, transform_indices = @transform_1, window_bounds = array<i64: 1, 32>}, {pipeline_mode = #tpu.pipeline_mode<synchronous>, transform_indices = @transform_2, window_bounds = array<i64: 1, 32>}, {transform_indices = @transform_3, window_bounds = array<i64: 16, 32>}]} {
    %c0 = arith.constant 0 : index
    %c0_0 = arith.constant 0 : index
    %0 = vector.load %arg1[%c0, %c0_0] : memref<16x32xf32, #tpu.memory_space<vmem>>, vector<16x32xf32>
    %cst = arith.constant dense<0.000000e+00> : vector<16xf32>
    %1 = vector.multi_reduction <add>, %0, %cst [1] : vector<16x32xf32> to vector<16xf32>
    %2 = vector.shape_cast %1 : vector<16xf32> to vector<16x1xf32>
    %cst_1 = arith.constant 3.200000e+01 : f32
    %3 = vector.broadcast %cst_1 : f32 to vector<16x1xf32>
    %4 = arith.divf %2, %3 : vector<16x1xf32>
    %5 = vector.broadcast %4 : vector<16x1xf32> to vector<16x32xf32>
    %6 = arith.subf %0, %5 : vector<16x32xf32>
    %7 = arith.mulf %6, %6 : vector<16x32xf32>
    %cst_2 = arith.constant dense<0.000000e+00> : vector<16xf32>
    %8 = vector.multi_reduction <add>, %7, %cst_2 [1] : vector<16x32xf32> to vector<16xf32>
    %9 = vector.shape_cast %8 : vector<16xf32> to vector<16x1xf32>
    %cst_3 = arith.constant 3.200000e+01 : f32
    %10 = vector.broadcast %cst_3 : f32 to vector<16x1xf32>
    %11 = arith.divf %9, %10 : vector<16x1xf32>
    %cst_4 = arith.constant 9.99999996E-13 : f32
    %12 = vector.broadcast %cst_4 : f32 to vector<16x1xf32>
    %13 = arith.addf %11, %12 : vector<16x1xf32>
    %14 = math.rsqrt %13 : vector<16x1xf32>
    %15 = vector.broadcast %14 : vector<16x1xf32> to vector<16x32xf32>
    %16 = arith.mulf %6, %15 : vector<16x32xf32>
    %c0_5 = arith.constant 0 : index
    %c0_6 = arith.constant 0 : index
    %17 = vector.load %arg2[%c0_5, %c0_6] : memref<1x32xf32, #tpu.memory_space<vmem>>, vector<1x32xf32>
    %18 = vector.broadcast %17 : vector<1x32xf32> to vector<16x32xf32>
    %19 = arith.mulf %16, %18 : vector<16x32xf32>
    %c0_7 = arith.constant 0 : index
    %c0_8 = arith.constant 0 : index
    %20 = vector.load %arg3[%c0_7, %c0_8] : memref<1x32xf32, #tpu.memory_space<vmem>>, vector<1x32xf32>
    %21 = vector.broadcast %20 : vector<1x32xf32> to vector<16x32xf32>
    %22 = arith.addf %19, %21 : vector<16x32xf32>
    %23 = arith.truncf %22 : vector<16x32xf32> to vector<16x32xbf16>
    %c0_9 = arith.constant 0 : index
    %c0_10 = arith.constant 0 : index
    %24 = vector.load %arg4[%c0_9, %c0_10] : memref<16x32xbf16, #tpu.memory_space<vmem>>, vector<16x32xbf16>
    tpu.vector_store %arg4[%c0_9, %c0_10], %23 {strides = array<i32>} : memref<16x32xbf16, #tpu.memory_space<vmem>>, vector<16x32xbf16>,
    return
  }
  func.func @transform_0(%arg0: i32) -> (i32, i32) {
    %c0_i32 = arith.constant 0 : i32
    %c0_i32_0 = arith.constant 0 : i32
    return %arg0, %c0_i32 : i32, i32
  }
  func.func @transform_1(%arg0: i32) -> (i32, i32) {
    %c0_i32 = arith.constant 0 : i32
    %c0_i32_0 = arith.constant 0 : i32
    %c0_i32_1 = arith.constant 0 : i32
    return %c0_i32, %c0_i32_0 : i32, i32
  }
  func.func @transform_2(%arg0: i32) -> (i32, i32) {
    %c0_i32 = arith.constant 0 : i32
    %c0_i32_0 = arith.constant 0 : i32
    %c0_i32_1 = arith.constant 0 : i32
    return %c0_i32, %c0_i32_0 : i32, i32
  }
  func.func @transform_3(%arg0: i32) -> (i32, i32) {
    %c0_i32 = arith.constant 0 : i32
    %c0_i32_0 = arith.constant 0 : i32
    return %arg0, %c0_i32 : i32, i32
  }
}

</mosaic_0001>

<llo_original>
// kernel: tpu_custom_call.1
$region0: #{tpu_custom_call.1}
  #allocation0 [shape = 'u32[]', space=smem, size = 0x4, offset = 0x4, fixed_abs, tag = 'smem constant byte address 0x4 - core index']
  #allocation1 [shape = 'u32[144,128]{1,0:T(1,128)}', space=vmem, size = 0x12000, scoped, tag = 'internal scratch']
  %s0 = inlined_call_operand.hbm [shape: f32[16,32], index: 0, kind: input, shape index: {}]
  %s1 = inlined_call_operand.vmem [shape: f32[1,32], index: 1, kind: input, shape index: {}]
  %s2 = inlined_call_operand.vmem [shape: f32[1,32], index: 2, kind: input, shape index: {}]
  %s3 = inlined_call_operand.hbm [shape: bf16[16,32], index: 3, kind: output, shape index: {}]
  %s4 = sld [smem:[#allocation0]]
  $region26: #{tpu_custom_call.1} parent=0
    _
  %s6 = ssub.s32 1, %s4
  %s7 = scalar_select 0, %s6, %s4
  $region1: #{tpu_custom_call.1} parent=0
    #allocation2 [shape = 'u8[8192]{0}', space=vmem, size = 0x2000, scoped, tag = 'input window, operand 0, single buffered']
    #allocation3 [shape = 's32[1]{0}', space=sflag, size = 0x4, scoped, tag = 'scoped memory for tpu_custom_call.1']
    #allocation4 [shape = 's32[1]{0}', space=sflag, size = 0x4, scoped, tag = 'scoped memory for tpu_custom_call.1']
    #allocation5 [shape = 'u8[4096]{0}', space=vmem, size = 0x1000, scoped, tag = 'output window, operand 0, single buffered']
    %8 = vsyncpa [#allocation3], 0
    %9 = vsyncpa [#allocation4], 0
    // Predicated region
    $region2: #{tpu_custom_call.1} parent=1 // pred_check
      _
    $region3: #{tpu_custom_call.1} parent=1 // pred_check_branch
      %11 = sbr.rel (0) target = $region5
    $region4: #{tpu_custom_call.1} parent=1 // pred_region
      %s13 = ssub.s32 256, 256
      %14 = vsyncadd [#allocation3], %s13
      %s15 = sshll.u32 [#allocation2], 4
      %s16 = int_to_ptr.vmem [resolvable:$true] %s15
      %21 = dma.hbm_to_vmem [thread:$0]  %s0, 256, %s16, [#allocation3], 128, 128, 8
    $region5: #{tpu_custom_call.1} parent=1 // pred_fallthru
      _
    // Predicated region
    $region6: #{tpu_custom_call.1} parent=1 // pred_check
      _
    $region7: #{tpu_custom_call.1} parent=1 // pred_check_branch
      %23 = sbr.rel (0) target = $region9
    $region8: #{tpu_custom_call.1} parent=1 // pred_region
      _
    $region9: #{tpu_custom_call.1} parent=1 // pred_fallthru
      _
    // Predicated region
    $region10: #{tpu_custom_call.1} parent=1 // pred_check
      _
    $region11: #{tpu_custom_call.1} parent=1 // pred_check_branch
      %25 = sbr.rel (0) target = $region13
    $region12: #{tpu_custom_call.1} parent=1 // pred_region
      _
    $region13: #{tpu_custom_call.1} parent=1 // pred_fallthru
      _
    // Predicated region
    $region14: #{tpu_custom_call.1} parent=1 // pred_check
      _
    $region15: #{tpu_custom_call.1} parent=1 // pred_check_branch
      %27 = sbr.rel (0) target = $region17
    $region16: #{tpu_custom_call.1} parent=1 // pred_region
      %28 = dma.done [#allocation3], 256
    $region17: #{tpu_custom_call.1} parent=1 // pred_fallthru
      _
    %v29 = vld [vmem:[#allocation2] sm:$0xff]
    %v30 = vld [vmem:[#allocation2 + $0x8] sm:$0xff]
    %vm31 = vcmask 261120
    %v32 = vsel %vm31, %v29, 0.0
    %33 = vadd.xlane.f32.xlu0 %v32
    %v34 = vpop.xlane.xlu0 %33
    %v35 = vsel %vm31, %v30, 0.0
    %36 = vadd.xlane.f32.xlu0 %v35
    %v37 = vpop.xlane.xlu0 %36
    %v38 = vrcp.pop 32.0
    %v39 = vmul.f32 %v34, %v38
    %v40 = vmul.f32 %v37, %v38
    %v41 = vsub.f32 %v29, %v39
    %v42 = vsub.f32 %v30, %v40
    %v43 = vmul.f32 %v41, %v41
    %v44 = vmul.f32 %v42, %v42
    %v45 = vsel %vm31, %v43, 0.0
    %46 = vadd.xlane.f32.xlu0 %v45
    %v47 = vpop.xlane.xlu0 %46
    %v48 = vsel %vm31, %v44, 0.0
    %49 = vadd.xlane.f32.xlu0 %v48
    %v50 = vpop.xlane.xlu0 %49
    %v51 = vmul.f32 %v47, %v38
    %v52 = vmul.f32 %v50, %v38
    %v53 = vadd.f32 %v51, 1e-12
    %v54 = vadd.f32 %v52, 1e-12
    %v55 = vrsqrt.pop %v53
    %v56 = vrsqrt.pop %v54
    %v57 = vmul.f32 %v41, %v55
    %v58 = vmul.f32 %v42, %v56
    %v59 = vld [vmem:[%s1] sm:$0x1]
    %v61 = vlaneseq
    %v62 = vshrl.u32 %v61, 7
    %v63 = vsub.s32 0, %v62
    %v64 = vrot.slane %v59, %v63
    %v66 = vmul.f32 %v57, %v64
    %v67 = vmul.f32 %v58, %v64
    %v68 = vld [vmem:[%s2] sm:$0x1]
    %v70 = vlaneseq
    %v71 = vshrl.u32 %v70, 7
    %v72 = vsub.s32 0, %v71
    %v73 = vrot.slane %v68, %v72
    %v75 = vadd.f32 %v66, %v73
    %v76 = vadd.f32 %v67, %v73
    %v77 = vpack.c.bf16 %v76, %v75
    %v79 = vunpack.c.l.b16 %v77
    %v80 = vunpack.c.h.b16 %v77
    %v81 = vpack.c.b16 %v79, %v79
    %v82 = vpack.c.b16 %v80, %v80
    %vm85 = vcmask 257024
    %86 = vst.msk [vmem:[#allocation5] sm:$0xf] %vm85, %v81
    %87 = vst.msk [vmem:[#allocation5 + $0x4] sm:$0xf] %vm85, %v82
    // Predicated region
    $region18: #{tpu_custom_call.1} parent=1 // pred_check
      _
    $region19: #{tpu_custom_call.1} parent=1 // pred_check_branch
      %89 = sbr.rel (0) target = $region21
    $region20: #{tpu_custom_call.1} parent=1 // pred_region
      %s91 = ssub.s32 128, 128
      %92 = vsyncadd [#allocation4], %s91
      %s93 = sshll.u32 [#allocation5], 4
      %s94 = int_to_ptr.vmem [resolvable:$true] %s93
      %99 = dma.vmem_to_hbm [thread:$0]  %s94, 128, %s3, [#allocation4], 64, 64, 4
    $region21: #{tpu_custom_call.1} parent=1 // pred_fallthru
      _
    // Predicated region
    $region22: #{tpu_custom_call.1} parent=1 // pred_check
      _
    $region23: #{tpu_custom_call.1} parent=1 // pred_check_branch
      %101 = sbr.rel (0) target = $region25
    $region24: #{tpu_custom_call.1} parent=1 // pred_region
      %102 = dma.done [#allocation4], 128
    $region25: #{tpu_custom_call.1} parent=1 // pred_fallthru
      _
    %103 = vsyncpa [#allocation3], 1
    %104 = vsyncpa [#allocation4], 1

</llo_original>
